<compile_context>
chip_gen: v6e
topology: v6e:2x2x1
jax: 0.10.0
libtpu: 0.0.40
codegen_flags: <defaults>
</compile_context>

<pallas_src>
import numpy as np
import jax
import jax.numpy as jnp
from jax.experimental import pallas as pl
from jax.experimental.pallas import tpu as pltpu


_MXU_GATHER_MAX_C = 512          # above this, stream pre-gathered weights instead


def _round_up(x, m):
    return (x + m - 1) // m * m


def _cdiv(a, b):
    return -(-a // b)


def _choose_row_tile(n_rows, streamed_row_bytes, vmem_budget):
    """Pick a row-tile size TN and the resulting tile count."""
    # ~8 MiB of streamed row data per grid step (>> the ~0.35 us fixed per-step
    # overhead), but never more than ~1/6 of the VMEM budget (double-buffered streams
    # plus headroom must still fit).
    per_step = min(8 << 20, max(vmem_budget // 6, 1 << 20))
    tn = max(1, per_step // max(streamed_row_bytes, 1))
    if tn >= 128:
        tn = min(2048, (tn // 128) * 128)
        if n_rows >= 2048:
            # keep >= ~8 tiles so v7x's two TensorCores both get work on big batches
            tn = min(tn, max(256, _round_up(_cdiv(n_rows, 8), 128)))
    else:
        tn = _round_up(tn, 8)          # very wide C: small sublane-aligned tile
    if tn >= n_rows:
        tn = _round_up(n_rows, 8)      # single tile covering all rows
    return tn, _cdiv(n_rows, tn)


def _log_probs(x_ref, adj_ref):
    """Numerically stable log_softmax(x - adjustment) along the class axis."""
    x = x_ref[...] - adj_ref[...]                       # (TN, C) - (1, C) broadcast
    row_max = jnp.max(x, axis=1, keepdims=True)
    shifted = x - row_max
    lse = jnp.log(jnp.sum(jnp.exp(shifted), axis=1, keepdims=True))
    return shifted - lse                                # (TN, C)


def _hybrid_loss_mxu_kernel(x_ref, tgt_ref, m_ref, adj_ref, out_ref):
    # x_ref: (TN, C) f32, tgt_ref: (TN, 1) i32, m_ref: (Cp, Cp) f32 resident,
    # adj_ref: (1, C) f32 resident, out_ref: (TN, 1) f32 per-row weighted log-prob sum.
    log_probs = _log_probs(x_ref, adj_ref)                             # (TN, C)
    tn, c = x_ref.shape
    cp = m_ref.shape[0]
    class_ids = jax.lax.broadcasted_iota(jnp.int32, (tn, cp), 1)       # (TN, Cp)
    onehot = (class_ids == tgt_ref[...]).astype(jnp.float32)           # (TN, Cp)
    # Row gather of M via one-hot matmul on the MXU (256-aligned contraction).
    weights = jnp.dot(onehot, m_ref[...],
                      preferred_element_type=jnp.float32)              # == M[targets]
    out_ref[...] = jnp.sum(weights[:, :c] * log_probs, axis=1, keepdims=True)


def _hybrid_loss_streamed_kernel(x_ref, w_ref, adj_ref, out_ref):
    # x_ref/w_ref: (TN, C) f32 streamed, adj_ref: (1, C) f32 resident, out_ref: (TN, 1).
    log_probs = _log_probs(x_ref, adj_ref)
    out_ref[...] = jnp.sum(w_ref[...] * log_probs, axis=1, keepdims=True)


def hybrid_loss(inputs, targets, M, adjustment, reduction="mean", gather_mode="auto"):
    """inputs: (N, C) logits, targets: (N,) int, M: (C, C) gain matrix, adjustment: (C,)."""
    N, C = inputs.shape
    x = inputs.astype(jnp.float32)
    adj = adjustment.astype(jnp.float32).reshape(1, C)
    tgt_i32 = targets.astype(jnp.int32)

    if gather_mode == "auto":
        gather_mode = "mxu" if C <= _MXU_GATHER_MAX_C else "streamed"
    if gather_mode not in ("mxu", "streamed"):
        raise ValueError(f"unknown gather_mode: {gather_mode}")

    # Generation-aware VMEM budget (v5e/v6e: 128 MiB physical, v7x: 64 MiB).
    try:
        vmem_cap = int(pltpu.get_tpu_info().vmem_capacity_bytes)
    except Exception:
        vmem_cap = 128 * 1024 * 1024
    vmem_budget = vmem_cap * 3 // 4          # leave compiler-scratch headroom

    Cl = _round_up(C, 128)                   # lane footprint of one row in VMEM
    n_row_streams = 1 if gather_mode == "mxu" else 2
    TN, num_tiles = _choose_row_tile(N, n_row_streams * Cl * 4, vmem_budget)
    Np = num_tiles * TN

    x_spec = pl.BlockSpec((TN, C), lambda i: (i, 0))
    adj_spec = pl.BlockSpec((1, C), lambda i: (0, 0))        # resident, DMA'd once
    out_spec = pl.BlockSpec((TN, 1), lambda i: (i, 0))       # sublane-dense per-row loss
    out_shape = jax.ShapeDtypeStruct((Np, 1), jnp.float32)

    if gather_mode == "mxu":
        Cp = _round_up(max(C, 256), 256)     # fill the 256-wide MXU on v6e/v7x
        Mp = jnp.zeros((Cp, Cp), jnp.float32).at[:C, :C].set(M.astype(jnp.float32))
        tgt = tgt_i32.reshape(N, 1)
        operands = (x, tgt, Mp, adj)
        in_specs = [
            x_spec,
            pl.BlockSpec((TN, 1), lambda i: (i, 0)),         # targets: streamed per tile
            pl.BlockSpec((Cp, Cp), lambda i: (0, 0)),        # M: resident
            adj_spec,
        ]
        kernel = _hybrid_loss_mxu_kernel
        # double-buffered: x + (lane-padded) targets + M + adjustment + output
        est = 4 * (2 * TN * Cl + 2 * TN * 128 + 2 * Cp * Cp + 2 * 8 * Cl + 2 * TN * 128)
        cost = pl.CostEstimate(
            flops=2 * N * Cp * Cp,                       # one-hot @ M gather on the MXU
            transcendentals=N * C,                       # exp() in the softmax
            bytes_accessed=4 * (N * C + N + Cp * Cp + C + N),
        )
    else:
        # Exact wrapper-side gather; drops the matmul and the resident (C, C) M entirely.
        w = jnp.take(M.astype(jnp.float32), tgt_i32, axis=0)         # (N, C)
        operands = (x, w, adj)
        in_specs = [x_spec, pl.BlockSpec((TN, C), lambda i: (i, 0)), adj_spec]
        kernel = _hybrid_loss_streamed_kernel
        est = 4 * (2 * TN * Cl * 2 + 2 * 8 * Cl + 2 * TN * 128)
        cost = pl.CostEstimate(
            flops=4 * N * C,
            transcendentals=N * C,
            bytes_accessed=4 * (2 * N * C + C + N),
        )

    vmem_limit = int(min(vmem_budget, max(est + (8 << 20), 24 << 20)))

    per_row2d = pl.pallas_call(
        kernel,
        out_shape=out_shape,
        grid_spec=pltpu.PrefetchScalarGridSpec(
            num_scalar_prefetch=0,
            grid=(num_tiles,),
            in_specs=in_specs,
            out_specs=out_spec,
        ),
        compiler_params=pltpu.CompilerParams(
            dimension_semantics=("parallel",),    # megacore / dual-TC sharding on v7x
            vmem_limit_bytes=vmem_limit,
        ),
        cost_estimate=cost,
    )(*operands)

    per_row = per_row2d.reshape(-1)[:N]      # drop the ragged-tile garbage rows
    if reduction == "mean":
        return -jnp.mean(per_row)
    return -per_row


def make_gain(G):
    """Mirror HybridLoss.gain: D = diag(diag(G)), M = G @ inv(D), adjustment = log(diag(D))."""
    d = np.diag(G)
    M = G / d[None, :]                       # G @ inv(D) divides column j by D[j, j]
    adjustment = np.log(d)
    return M.astype(np.float32), adjustment.astype(np.float32)


def reference_loss(inputs, targets, M, adjustment, reduction="mean"):
    log_probs = jax.nn.log_softmax(inputs - adjustment[None, :], axis=1)
    weights = M[targets]
    per_row = jnp.sum(weights * log_probs, axis=1)
    if reduction == "mean":
        return -jnp.mean(per_row)
    return -per_row


if __name__ == "__main__":
    key = jax.random.PRNGKey(0)

    # Case 1: small canonical shape (N=8 rows, C=32 classes) -> MXU-gather path (auto).
    N, C = 8, 32
    k1, k2, k3, k4 = jax.random.split(key, 4)
    inputs = jax.random.normal(k1, (N, C), dtype=jnp.float32)
    targets = jax.random.randint(k2, (N,), 0, C, dtype=jnp.int32)
    G_np = np.abs(np.array(jax.random.normal(k3, (C, C)), dtype=np.float64)) + np.eye(C)
    M_np, adj_np = make_gain(G_np)
    M = jnp.asarray(M_np)
    adjustment = jnp.asarray(adj_np)

    out_mean = jax.block_until_ready(hybrid_loss(inputs, targets, M, adjustment, "mean"))
    ref_mean = reference_loss(inputs, targets, M, adjustment, "mean")
    assert np.allclose(np.asarray(out_mean), np.asarray(ref_mean),
                       rtol=1e-5, atol=1e-5), (out_mean, ref_mean)

    out_none = jax.block_until_ready(hybrid_loss(inputs, targets, M, adjustment, "none"))
    ref_none = reference_loss(inputs, targets, M, adjustment, "none")
    assert np.allclose(np.asarray(out_none), np.asarray(ref_none), rtol=1e-5, atol=1e-5)

    # Case 2: ragged row count + non-128 class count; exercise BOTH gather strategies and
    # cross-check them against each other and the exact XLA reference.
    N2, C2 = 13, 48
    k5, k6, k7 = jax.random.split(k4, 3)
    inputs2 = jax.random.normal(k5, (N2, C2), dtype=jnp.float32)
    targets2 = jax.random.randint(k6, (N2,), 0, C2, dtype=jnp.int32)
    G2_np = np.abs(np.array(jax.random.normal(k7, (C2, C2)), dtype=np.float64)) + np.eye(C2)
    M2_np, adj2_np = make_gain(G2_np)
    M2 = jnp.asarray(M2_np)
    adj2 = jnp.asarray(adj2_np)

    ref2 = reference_loss(inputs2, targets2, M2, adj2, "none")
    out2_mxu = jax.block_until_ready(
        hybrid_loss(inputs2, targets2, M2, adj2, "none", gather_mode="mxu"))
    out2_str = jax.block_until_ready(
        hybrid_loss(inputs2, targets2, M2, adj2, "none", gather_mode="streamed"))
    assert np.allclose(np.asarray(out2_mxu), np.asarray(ref2), rtol=1e-5, atol=1e-5)
    assert np.allclose(np.asarray(out2_str), np.asarray(ref2), rtol=1e-5, atol=1e-5)
    assert np.allclose(np.asarray(out2_mxu), np.asarray(out2_str), rtol=1e-5, atol=1e-5)

    print("KERNEL_OK")
</pallas_src>

<mosaic_0001>
module attributes {stable_mosaic.version = 11 : i64} {
  func.func @_hybrid_loss_mxu_kernel(%arg0: i32, %arg1: memref<8x32xf32, #tpu.memory_space<vmem>>, %arg2: memref<8x1xi32, #tpu.memory_space<vmem>>, %arg3: memref<256x256xf32, #tpu.memory_space<vmem>>, %arg4: memref<1x32xf32, #tpu.memory_space<vmem>>, %arg5: memref<8x1xf32, #tpu.memory_space<vmem>>) attributes {dimension_semantics = [#tpu.dimension_semantics<parallel>], iteration_bounds = array<i64: 1>, scalar_prefetch = 0 : i64, scratch_operands = 0 : i64, tpu.core_type = #tpu.core_type<tc>, window_params = [{transform_indices = @transform_0, window_bounds = array<i64: 8, 32>}, {transform_indices = @transform_1, window_bounds = array<i64: 8, 1>}, {pipeline_mode = #tpu.pipeline_mode<synchronous>, transform_indices = @transform_2, window_bounds = array<i64: 256, 256>}, {pipeline_mode = #tpu.pipeline_mode<synchronous>, transform_indices = @transform_3, window_bounds = array<i64: 1, 32>}, {transform_indices = @transform_4, window_bounds = array<i64: 8, 1>}]} {
    %c0 = arith.constant 0 : index
    %c0_0 = arith.constant 0 : index
    %0 = vector.load %arg1[%c0, %c0_0] : memref<8x32xf32, #tpu.memory_space<vmem>>, vector<8x32xf32>
    %c0_1 = arith.constant 0 : index
    %c0_2 = arith.constant 0 : index
    %1 = vector.load %arg4[%c0_1, %c0_2] : memref<1x32xf32, #tpu.memory_space<vmem>>, vector<1x32xf32>
    %2 = vector.broadcast %1 : vector<1x32xf32> to vector<8x32xf32>
    %3 = arith.subf %0, %2 : vector<8x32xf32>
    %cst = arith.constant dense<0xFF800000> : vector<8xf32>
    %4 = vector.multi_reduction <maximumf>, %3, %cst [1] : vector<8x32xf32> to vector<8xf32>
    %5 = vector.shape_cast %4 : vector<8xf32> to vector<8x1xf32>
    %6 = vector.broadcast %5 : vector<8x1xf32> to vector<8x32xf32>
    %7 = arith.subf %3, %6 : vector<8x32xf32>
    %8 = math.exp %7 : vector<8x32xf32>
    %cst_3 = arith.constant dense<0.000000e+00> : vector<8xf32>
    %9 = vector.multi_reduction <add>, %8, %cst_3 [1] : vector<8x32xf32> to vector<8xf32>
    %10 = vector.shape_cast %9 : vector<8xf32> to vector<8x1xf32>
    %11 = math.log %10 : vector<8x1xf32>
    %12 = vector.broadcast %11 : vector<8x1xf32> to vector<8x32xf32>
    %13 = arith.subf %7, %12 : vector<8x32xf32>
    %14 = tpu.iota {dimensions = array<i32: 1>} : vector<8x256xi32>
    %c0_4 = arith.constant 0 : index
    %c0_5 = arith.constant 0 : index
    %15 = vector.load %arg2[%c0_4, %c0_5] : memref<8x1xi32, #tpu.memory_space<vmem>>, vector<8x1xi32>
    %16 = vector.broadcast %15 : vector<8x1xi32> to vector<8x256xi32>
    %17 = arith.cmpi eq, %14, %16 : vector<8x256xi32>
    %18 = arith.extui %17 : vector<8x256xi1> to vector<8x256xi32>
    %19 = arith.sitofp %18 : vector<8x256xi32> to vector<8x256xf32>
    %c0_6 = arith.constant 0 : index
    %c0_7 = arith.constant 0 : index
    %20 = vector.load %arg3[%c0_6, %c0_7] : memref<256x256xf32, #tpu.memory_space<vmem>>, vector<256x256xf32>
    %cst_8 = arith.constant dense<0.000000e+00> : vector<8x256xf32>
    %21 = tpu.matmul %19, %20, %cst_8 {dimension_numbers = #tpu.dot_dimension_numbers<[1], [0], [0], [1], [0, 0, 1, 1], [], []>} : vector<8x256xf32>, vector<256x256xf32>, vector<8x256xf32> -> vector<8x256xf32>
    %22 = vector.extract_strided_slice %21 {offsets = [0, 0], sizes = [8, 32], strides = [1, 1]} : vector<8x256xf32> to vector<8x32xf32>
    %23 = arith.mulf %22, %13 : vector<8x32xf32>
    %cst_9 = arith.constant dense<0.000000e+00> : vector<8xf32>
    %24 = vector.multi_reduction <add>, %23, %cst_9 [1] : vector<8x32xf32> to vector<8xf32>
    %25 = vector.shape_cast %24 : vector<8xf32> to vector<8x1xf32>
    %c0_10 = arith.constant 0 : index
    %c0_11 = arith.constant 0 : index
    %26 = vector.load %arg5[%c0_10, %c0_11] : memref<8x1xf32, #tpu.memory_space<vmem>>, vector<8x1xf32>
    tpu.vector_store %arg5[%c0_10, %c0_11], %25 {strides = array<i32>} : memref<8x1xf32, #tpu.memory_space<vmem>>, vector<8x1xf32>,
    return
  }
  func.func @transform_0(%arg0: i32) -> (i32, i32) {
    %c0_i32 = arith.constant 0 : i32
    %c0_i32_0 = arith.constant 0 : i32
    return %arg0, %c0_i32 : i32, i32
  }
  func.func @transform_1(%arg0: i32) -> (i32, i32) {
    %c0_i32 = arith.constant 0 : i32
    %c0_i32_0 = arith.constant 0 : i32
    return %arg0, %c0_i32 : i32, i32
  }
  func.func @transform_2(%arg0: i32) -> (i32, i32) {
    %c0_i32 = arith.constant 0 : i32
    %c0_i32_0 = arith.constant 0 : i32
    %c0_i32_1 = arith.constant 0 : i32
    return %c0_i32, %c0_i32_0 : i32, i32
  }
  func.func @transform_3(%arg0: i32) -> (i32, i32) {
    %c0_i32 = arith.constant 0 : i32
    %c0_i32_0 = arith.constant 0 : i32
    %c0_i32_1 = arith.constant 0 : i32
    return %c0_i32, %c0_i32_0 : i32, i32
  }
  func.func @transform_4(%arg0: i32) -> (i32, i32) {
    %c0_i32 = arith.constant 0 : i32
    %c0_i32_0 = arith.constant 0 : i32
    return %arg0, %c0_i32 : i32, i32
  }
}

</mosaic_0001>

<llo_original>
// kernel: tpu_custom_call.1
$region0: #{tpu_custom_call.1}
  #allocation0 [shape = 'u32[]', space=smem, size = 0x4, offset = 0x4, fixed_abs, tag = 'smem constant byte address 0x4 - core index']
  #allocation1 [shape = 'u32[144,128]{1,0:T(1,128)}', space=vmem, size = 0x12000, scoped, tag = 'internal scratch']
  %s0 = inlined_call_operand.vmem [shape: f32[8,32], index: 0, kind: input, shape index: {}]
  %s1 = inlined_call_operand.vmem [shape: s32[8,1], index: 1, kind: input, shape index: {}]
  %s2 = inlined_call_operand.hbm [shape: f32[256,256], index: 2, kind: input, shape index: {}]
  %s3 = inlined_call_operand.vmem [shape: f32[1,32], index: 3, kind: input, shape index: {}]
  %s4 = inlined_call_operand.vmem [shape: f32[8,1], index: 4, kind: output, shape index: {}]
  %s5 = sld [smem:[#allocation0]]
  $region30: #{tpu_custom_call.1} parent=0
    _
  %s7 = ssub.s32 1, %s5
  %s8 = scalar_select 0, %s7, %s5
  $region1: #{tpu_custom_call.1} parent=0
    #allocation2 [shape = 'u8[262144]{0}', space=vmem, size = 0x40000, scoped, tag = 'input window, operand 2, single buffered']
    #allocation3 [shape = 's32[1]{0}', space=sflag, size = 0x4, scoped, tag = 'scoped memory for tpu_custom_call.1']
    %9 = vsyncpa [#allocation3], 0
    // Predicated region
    $region2: #{tpu_custom_call.1} parent=1 // pred_check
      _
    $region3: #{tpu_custom_call.1} parent=1 // pred_check_branch
      %11 = sbr.rel (0) target = $region5
    $region4: #{tpu_custom_call.1} parent=1 // pred_region
      _
    $region5: #{tpu_custom_call.1} parent=1 // pred_fallthru
      _
    // Predicated region
    $region6: #{tpu_custom_call.1} parent=1 // pred_check
      _
    $region7: #{tpu_custom_call.1} parent=1 // pred_check_branch
      %13 = sbr.rel (0) target = $region9
    $region8: #{tpu_custom_call.1} parent=1 // pred_region
      _
    $region9: #{tpu_custom_call.1} parent=1 // pred_fallthru
      _
    // Predicated region
    $region10: #{tpu_custom_call.1} parent=1 // pred_check
      _
    $region11: #{tpu_custom_call.1} parent=1 // pred_check_branch
      %15 = sbr.rel (0) target = $region13
    $region12: #{tpu_custom_call.1} parent=1 // pred_region
      %s17 = ssub.s32 8192, 8192
      %18 = vsyncadd [#allocation3], %s17
      %s19 = sshll.u32 [#allocation2], 4
      %s20 = int_to_ptr.vmem [resolvable:$true] %s19
      %25 = dma.hbm_to_vmem [thread:$0]  %s2, 8192, %s20, [#allocation3], 256, 256, 16
    $region13: #{tpu_custom_call.1} parent=1 // pred_fallthru
      _
    // Predicated region
    $region14: #{tpu_custom_call.1} parent=1 // pred_check
      _
    $region15: #{tpu_custom_call.1} parent=1 // pred_check_branch
      %27 = sbr.rel (0) target = $region17
    $region16: #{tpu_custom_call.1} parent=1 // pred_region
      _
    $region17: #{tpu_custom_call.1} parent=1 // pred_fallthru
      _
    // Predicated region
    $region18: #{tpu_custom_call.1} parent=1 // pred_check
      _
    $region19: #{tpu_custom_call.1} parent=1 // pred_check_branch
      %29 = sbr.rel (0) target = $region21
    $region20: #{tpu_custom_call.1} parent=1 // pred_region
      %30 = dma.done [#allocation3], 8192
    $region21: #{tpu_custom_call.1} parent=1 // pred_fallthru
      _
    %v31 = vld [vmem:[%s0] sm:$0xff]
    %v32 = vld [vmem:[%s3] sm:$0x1]
    %v34 = vlaneseq
    %v35 = vshrl.u32 %v34, 7
    %v36 = vsub.s32 0, %v35
    %v37 = vrot.slane %v32, %v36
    %v39 = vsub.f32 %v31, %v37
    %vm40 = vcmask 261120
    %v41 = vsel %vm40, %v39, -inf
    %42 = vmax.xlane.f32.xlu0 %v41
    %v43 = vpop.xlane.xlu0 %42
    %v44 = vsub.f32 %v39, %v43
    %v45 = vmul.f32 %v44, 1.442695
    %v46 = vpow.pop %v45
    %v47 = vsel %vm40, %v46, 0.0
    %48 = vadd.xlane.f32.xlu0 %v47
    %v49 = vpop.xlane.xlu0 %48
    %v50 = vlog2.pop %v49
    %v51 = vmul.f32 %v50, 0.6931472
    %v52 = vsub.f32 %v44, %v51
    %v53 = vlaneseq
    %v54 = vand.u32 %v53, 127
    %v55 = vadd.s32 %v54, 128
    %v56 = vld [vmem:[%s1] sm:$0xff]
    %57 = vset.pattern.permute.xlu0 0
    %58 = vperm.xlu0 %57, %v56
    %v59 = vpop.permute.xlu0 %58
    %vm60 = vcmp.eq.s32.totalorder %v54, %v59
    %vm61 = vcmp.eq.s32.totalorder %v55, %v59
    %v62 = vsel %vm60, 1, 0
    %v63 = vsel %vm61, 1, 0
    %v64 = vcvt.s32.f32 %v62
    %v65 = vcvt.s32.f32 %v63
    %v66 = vld [vmem:[#allocation2] sm:$0xff]
    %v67 = vld [vmem:[#allocation2 + $0x8] sm:$0xff]
    %v68 = vld [vmem:[#allocation2 + $0x10] sm:$0xff]
    %v69 = vld [vmem:[#allocation2 + $0x18] sm:$0xff]
    %v70 = vld [vmem:[#allocation2 + $0x20] sm:$0xff]
    %v71 = vld [vmem:[#allocation2 + $0x28] sm:$0xff]
    %v72 = vld [vmem:[#allocation2 + $0x30] sm:$0xff]
    %v73 = vld [vmem:[#allocation2 + $0x38] sm:$0xff]
    %v74 = vld [vmem:[#allocation2 + $0x40] sm:$0xff]
    %v75 = vld [vmem:[#allocation2 + $0x48] sm:$0xff]
    %v76 = vld [vmem:[#allocation2 + $0x50] sm:$0xff]
    %v77 = vld [vmem:[#allocation2 + $0x58] sm:$0xff]
    %v78 = vld [vmem:[#allocation2 + $0x60] sm:$0xff]
    %v79 = vld [vmem:[#allocation2 + $0x68] sm:$0xff]
    %v80 = vld [vmem:[#allocation2 + $0x70] sm:$0xff]
    %v81 = vld [vmem:[#allocation2 + $0x78] sm:$0xff]
    %v82 = vld [vmem:[#allocation2 + $0x80] sm:$0xff]
    %v83 = vld [vmem:[#allocation2 + $0x88] sm:$0xff]
    %v84 = vld [vmem:[#allocation2 + $0x90] sm:$0xff]
    %v85 = vld [vmem:[#allocation2 + $0x98] sm:$0xff]
    %v86 = vld [vmem:[#allocation2 + $0xa0] sm:$0xff]
    %v87 = vld [vmem:[#allocation2 + $0xa8] sm:$0xff]
    %v88 = vld [vmem:[#allocation2 + $0xb0] sm:$0xff]
    %v89 = vld [vmem:[#allocation2 + $0xb8] sm:$0xff]
    %v90 = vld [vmem:[#allocation2 + $0xc0] sm:$0xff]
    %v91 = vld [vmem:[#allocation2 + $0xc8] sm:$0xff]
    %v92 = vld [vmem:[#allocation2 + $0xd0] sm:$0xff]
    %v93 = vld [vmem:[#allocation2 + $0xd8] sm:$0xff]
    %v94 = vld [vmem:[#allocation2 + $0xe0] sm:$0xff]
    %v95 = vld [vmem:[#allocation2 + $0xe8] sm:$0xff]
    %v96 = vld [vmem:[#allocation2 + $0xf0] sm:$0xff]
    %v97 = vld [vmem:[#allocation2 + $0xf8] sm:$0xff]
    %v98 = vld [vmem:[#allocation2 + $0x100] sm:$0xff]
    %v99 = vld [vmem:[#allocation2 + $0x108] sm:$0xff]
    %v100 = vld [vmem:[#allocation2 + $0x110] sm:$0xff]
    %v101 = vld [vmem:[#allocation2 + $0x118] sm:$0xff]
    %v102 = vld [vmem:[#allocation2 + $0x120] sm:$0xff]
    %v103 = vld [vmem:[#allocation2 + $0x128] sm:$0xff]
    %v104 = vld [vmem:[#allocation2 + $0x130] sm:$0xff]
    %v105 = vld [vmem:[#allocation2 + $0x138] sm:$0xff]
    %v106 = vld [vmem:[#allocation2 + $0x140] sm:$0xff]
    %v107 = vld [vmem:[#allocation2 + $0x148] sm:$0xff]
    %v108 = vld [vmem:[#allocation2 + $0x150] sm:$0xff]
    %v109 = vld [vmem:[#allocation2 + $0x158] sm:$0xff]
    %v110 = vld [vmem:[#allocation2 + $0x160] sm:$0xff]
    %v111 = vld [vmem:[#allocation2 + $0x168] sm:$0xff]
    %v112 = vld [vmem:[#allocation2 + $0x170] sm:$0xff]
    %v113 = vld [vmem:[#allocation2 + $0x178] sm:$0xff]
    %v114 = vld [vmem:[#allocation2 + $0x180] sm:$0xff]
    %v115 = vld [vmem:[#allocation2 + $0x188] sm:$0xff]
    %v116 = vld [vmem:[#allocation2 + $0x190] sm:$0xff]
    %v117 = vld [vmem:[#allocation2 + $0x198] sm:$0xff]
    %v118 = vld [vmem:[#allocation2 + $0x1a0] sm:$0xff]
    %v119 = vld [vmem:[#allocation2 + $0x1a8] sm:$0xff]
    %v120 = vld [vmem:[#allocation2 + $0x1b0] sm:$0xff]
    %v121 = vld [vmem:[#allocation2 + $0x1b8] sm:$0xff]
    %v122 = vld [vmem:[#allocation2 + $0x1c0] sm:$0xff]
    %v123 = vld [vmem:[#allocation2 + $0x1c8] sm:$0xff]
    %v124 = vld [vmem:[#allocation2 + $0x1d0] sm:$0xff]
    %v125 = vld [vmem:[#allocation2 + $0x1d8] sm:$0xff]
    %v126 = vld [vmem:[#allocation2 + $0x1e0] sm:$0xff]
    %v127 = vld [vmem:[#allocation2 + $0x1e8] sm:$0xff]
    %v128 = vld [vmem:[#allocation2 + $0x1f0] sm:$0xff]
    %v129 = vld [vmem:[#allocation2 + $0x1f8] sm:$0xff]
    %130 = vmatprep.subr.mxu0 %v97
    %131 = vmatpush1.msra.mxu0 %v96
    %132 = vmatprep.subr.mxu0 %v95
    %133 = vmatpush1.msra.mxu0 %v94
    %134 = vmatprep.subr.mxu0 %v93
    %135 = vmatpush1.msra.mxu0 %v92
    %136 = vmatprep.subr.mxu0 %v91
    %137 = vmatpush1.msra.mxu0 %v90
    %138 = vmatprep.subr.mxu0 %v89
    %139 = vmatpush1.msra.mxu0 %v88
    %140 = vmatprep.subr.mxu0 %v87
    %141 = vmatpush1.msra.mxu0 %v86
    %142 = vmatprep.subr.mxu0 %v85
    %143 = vmatpush1.msra.mxu0 %v84
    %144 = vmatprep.subr.mxu0 %v83
    %145 = vmatpush1.msra.mxu0 %v82
    %146 = vmatprep.subr.mxu0 %v81
    %147 = vmatpush1.msra.mxu0 %v80
    %148 = vmatprep.subr.mxu0 %v79
    %149 = vmatpush1.msra.mxu0 %v78
    %150 = vmatprep.subr.mxu0 %v77
    %151 = vmatpush1.msra.mxu0 %v76
    %152 = vmatprep.subr.mxu0 %v75
    %153 = vmatpush1.msra.mxu0 %v74
    %154 = vmatprep.subr.mxu0 %v73
    %155 = vmatpush1.msra.mxu0 %v72
    %156 = vmatprep.subr.mxu0 %v71
    %157 = vmatpush1.msra.mxu0 %v70
    %158 = vmatprep.subr.mxu0 %v69
    %159 = vmatpush1.msra.mxu0 %v68
    %160 = vmatprep.subr.mxu0 %v67
    %161 = vmatpush1.msra.mxu0 %v66
    %162 = vmatprep.subr.mxu0 %v129
    %163 = vmatpush2.msra.mxu0 %v128
    %164 = vmatprep.subr.mxu0 %v127
    %165 = vmatpush2.msra.mxu0 %v126
    %166 = vmatprep.subr.mxu0 %v125
    %167 = vmatpush2.msra.mxu0 %v124
    %168 = vmatprep.subr.mxu0 %v123
    %169 = vmatpush2.msra.mxu0 %v122
    %170 = vmatprep.subr.mxu0 %v121
    %171 = vmatpush2.msra.mxu0 %v120
    %172 = vmatprep.subr.mxu0 %v119
    %173 = vmatpush2.msra.mxu0 %v118
    %174 = vmatprep.subr.mxu0 %v117
    %175 = vmatpush2.msra.mxu0 %v116
    %176 = vmatprep.subr.mxu0 %v115
    %177 = vmatpush2.msra.mxu0 %v114
    %178 = vmatprep.subr.mxu0 %v113
    %179 = vmatpush2.msra.mxu0 %v112
    %180 = vmatprep.subr.mxu0 %v111
    %181 = vmatpush2.msra.mxu0 %v110
    %182 = vmatprep.subr.mxu0 %v109
    %183 = vmatpush2.msra.mxu0 %v108
    %184 = vmatprep.subr.mxu0 %v107
    %185 = vmatpush2.msra.mxu0 %v106
    %186 = vmatprep.subr.mxu0 %v105
    %187 = vmatpush2.msra.mxu0 %v104
    %188 = vmatprep.subr.mxu0 %v103
    %189 = vmatpush2.msra.mxu0 %v102
    %190 = vmatprep.subr.mxu0 %v101
    %191 = vmatpush2.msra.mxu0 %v100
    %192 = vmatprep.subr.mxu0 %v99
    %193 = vmatpush2.msra.mxu0 %v98
    %194 = vmatprep.mubr.f32.mxu0 %v65
    %195 = vmatmul.mubr.f32.gmra.mxu0 %v64
    %v196 = vpop.f32.mrf.mxu0
    %v197 = vadd.f32 0.0, %v196
    %v198 = vpop.f32.mrf.mxu0
    %199 = vdwg.mxu0
    %v200 = vmul.f32 %v197, %v52
    %v201 = vsel %vm40, %v200, 0.0
    %202 = vadd.xlane.f32.xlu0 %v201
    %v203 = vpop.xlane.xlu0 %202
    %vm204 = vcmask 7168
    %205 = vst.msk [vmem:[%s4] sm:$0xff] %vm204, %v203
    // Predicated region
    $region22: #{tpu_custom_call.1} parent=1 // pred_check
      _
    $region23: #{tpu_custom_call.1} parent=1 // pred_check_branch
      %207 = sbr.rel (0) target = $region25
    $region24: #{tpu_custom_call.1} parent=1 // pred_region
      _
    $region25: #{tpu_custom_call.1} parent=1 // pred_fallthru
      _
    // Predicated region
    $region26: #{tpu_custom_call.1} parent=1 // pred_check
      _
    $region27: #{tpu_custom_call.1} parent=1 // pred_check_branch
      %209 = sbr.rel (0) target = $region29
    $region28: #{tpu_custom_call.1} parent=1 // pred_region
      _
    $region29: #{tpu_custom_call.1} parent=1 // pred_fallthru
      _
    %210 = vsyncpa [#allocation3], 1

</llo_original>
